<compile_context>
chip_gen: v7x
topology: tpu7x:2x2x1
jax: 0.10.0
libtpu: 0.0.40
codegen_flags: <defaults>
</compile_context>

<pallas_src>
import jax
import jax.numpy as jnp
from jax.experimental import pallas as pl
from jax.experimental.pallas import tpu as pltpu

DIM = 5
NUM_LAYERS = 2  # module's self.num_layers


def _feature_kernel(xa_ref, xb_ref, w0a_ref, w0b_ref, b0_ref, ws_ref, bs_ref, o_ref):
    """One (batch, N-tile) block of the FeatureModel forward, channels-on-sublanes.

    xa_ref : (1, Ca, TN)  f32   pos_2d tile      (N on lanes)
    xb_ref : (1, Cb, TN)  f32   bone_angle tile  (N on lanes)
    w0a_ref: (C, Ca)      bf16  expand conv weight (pos part, BN scale folded)
    w0b_ref: (C, Cb)      bf16  expand conv weight (bone part, BN scale folded)
    b0_ref : (C, 1)       f32   expand BN shift
    ws_ref : (4, C, C)    bf16  residual conv weights (BN scale folded)
    bs_ref : (4, C, 1)    f32   residual BN shifts
    o_ref  : (1, C, TN)   f32   output tile
    """
    # Hoist the tiny weight/shift loads out of the chunk loop.
    w0a = w0a_ref[...]
    w0b = w0b_ref[...]
    b0 = b0_ref[...]
    ws = [ws_ref[k] for k in range(2 * NUM_LAYERS)]
    bs = [bs_ref[k] for k in range(2 * NUM_LAYERS)]

    tn = o_ref.shape[-1]
    # Lane chunk that bounds the in-register working set (h + res) to < 64 vregs.
    chunk = tn
    for cand in (512, 384, 256, 128):
        if tn % cand == 0:
            chunk = cand
            break

    def compute(xa, xb):
        # expand_conv -> expand_bn -> relu   (dropout = identity in eval)
        h = jnp.dot(w0a, xa, preferred_element_type=jnp.float32)
        h = h + jnp.dot(w0b, xb, preferred_element_type=jnp.float32)
        h = jnp.maximum(h + b0, 0.0)
        # two residual blocks, each: (conv -> bn -> relu) x2, then residual add
        for i in range(NUM_LAYERS):
            res = h
            for j in range(2):
                k = 2 * i + j
                h = jnp.dot(ws[k], h.astype(jnp.bfloat16),
                            preferred_element_type=jnp.float32)
                h = jnp.maximum(h + bs[k], 0.0)
            h = res + h
        return h

    # Static chunk loop: static slices are free views; each chunk ends in a
    # store, so live ranges stay bounded per chunk.
    for c in range(tn // chunk):
        lo, hi = c * chunk, (c + 1) * chunk
        xa = xa_ref[0, :, lo:hi].astype(jnp.bfloat16)
        xb = xb_ref[0, :, lo:hi].astype(jnp.bfloat16)
        o_ref[0, :, lo:hi] = compute(xa, xb).astype(o_ref.dtype)


def fold_params_for_kernel(params, ca):
    """Fold BN scale into conv weights (bf16 MXU operands); keep f32 shifts.

    Call ONCE (outside the per-step path); the returned tuple is what the
    jitted forward consumes.  `ca` = V1*C1 (pos_2d channel count) — the expand
    weight is split so the wrapper concat can be eliminated.
    """
    w0 = params["w0"] * params["s0"][:, None]                              # (C, Cin)
    w0a = w0[:, :ca].astype(jnp.bfloat16)                                  # (C, Ca)
    w0b = w0[:, ca:].astype(jnp.bfloat16)                                  # (C, Cb)
    b0 = params["b0"].reshape(-1, 1).astype(jnp.float32)                   # (C, 1)
    ws = (params["ws"] * params["ss"][:, :, None]).astype(jnp.bfloat16)    # (4, C, C)
    bs = params["bs"].reshape(params["bs"].shape[0], -1, 1).astype(jnp.float32)
    return w0a, w0b, b0, ws, bs


def feature_model_forward(pos_2d, bone_angle, folded, *, tile_n=4096):
    """FeatureModel.forward (eval mode) with the Pallas kernel on the hot path.

    pos_2d:     (B, V1, C1, N) f32
    bone_angle: (B, V2, C2, N) f32
    folded:     output of fold_params_for_kernel
    returns:    (B, channels // DIM, DIM, 1, N) f32
    """
    B, V1, C1, N = pos_2d.shape
    _, V2, C2, _ = bone_angle.shape
    ca, cb = V1 * C1, V2 * C2

    # Free views (contiguous dim merges) — no concat, no HBM pass.
    xa = pos_2d.reshape(B, ca, N)
    xb = bone_angle.reshape(B, cb, N)

    w0a, w0b, b0, ws, bs = folded
    channels = w0a.shape[0]
    assert channels % DIM == 0

    # Lane tile: multiple of 128 (or the full, small N).  No explicit padding,
    # no post-slice: Pallas handles the ragged last block with a masked store.
    if N < 128:
        tn = N  # block == full lane dim (allowed); tiny-N path
        # TODO(synk): if tiny N is the production regime, fold B onto the lane
        # axis instead of accepting masked 16-lane stores.
    else:
        n128 = pl.cdiv(N, 128)
        tb = min(max(tile_n // 128, 1), n128)
        if B == 1 and n128 >= 2:
            tb = min(tb, pl.cdiv(n128, 2))  # keep >=2 parallel steps (v7x: 2 TCs)
        tn = 128 * tb

    grid = (B, pl.cdiv(N, tn))

    out = pl.pallas_call(
        _feature_kernel,
        out_shape=jax.ShapeDtypeStruct((B, channels, N), jnp.float32),
        grid_spec=pltpu.PrefetchScalarGridSpec(
            num_scalar_prefetch=0,
            grid=grid,
            in_specs=[
                pl.BlockSpec((1, ca, tn), lambda b, n: (b, 0, n)),
                pl.BlockSpec((1, cb, tn), lambda b, n: (b, 0, n)),
                pl.BlockSpec((channels, ca), lambda b, n: (0, 0)),
                pl.BlockSpec((channels, cb), lambda b, n: (0, 0)),
                pl.BlockSpec((channels, 1), lambda b, n: (0, 0)),
                pl.BlockSpec((2 * NUM_LAYERS, channels, channels),
                             lambda b, n: (0, 0, 0)),
                pl.BlockSpec((2 * NUM_LAYERS, channels, 1),
                             lambda b, n: (0, 0, 0)),
            ],
            out_specs=pl.BlockSpec((1, channels, tn), lambda b, n: (b, 0, n)),
        ),
        compiler_params=pltpu.CompilerParams(
            dimension_semantics=("parallel", "parallel")),
    )(xa, xb, w0a, w0b, b0, ws, bs)

    # (B, C, N) == contiguous (B, C, 1, N) -> PyTorch .view(B, -1, DIM, 1, N)
    return out.reshape(B, channels // DIM, DIM, 1, N)


def make_params(key, in_channels, channels, eps=1e-5):
    """Deterministic synthetic parameters mirroring the PyTorch module shapes.

    Conv2d(cin, cout, 1, bias=False) weight (cout, cin, 1, 1) -> stored (cout, cin).
    BatchNorm2d folded (inference) into per-channel scale/shift:
      scale = gamma / sqrt(running_var + eps), shift = beta - running_mean * scale.
    """
    keys = jax.random.split(key, 20)
    ki = iter(range(20))

    def bn_fold(kg, kb, c):
        gamma = 1.0 + 0.1 * jax.random.normal(kg, (c,), jnp.float32)
        beta = 0.1 * jax.random.normal(kb, (c,), jnp.float32)
        running_mean = jnp.zeros((c,), jnp.float32)
        running_var = jnp.ones((c,), jnp.float32)
        scale = gamma / jnp.sqrt(running_var + eps)
        shift = beta - running_mean * scale
        return scale, shift

    w0 = 0.1 * jax.random.normal(keys[next(ki)], (channels, in_channels), jnp.float32)
    s0, b0 = bn_fold(keys[next(ki)], keys[next(ki)], channels)

    ws, ss, bs = [], [], []
    for _ in range(2 * NUM_LAYERS):
        ws.append(0.1 * jax.random.normal(keys[next(ki)], (channels, channels),
                                          jnp.float32))
        s, b = bn_fold(keys[next(ki)], keys[next(ki)], channels)
        ss.append(s)
        bs.append(b)

    return {
        "w0": w0, "s0": s0, "b0": b0,
        "ws": jnp.stack(ws, 0),   # (4, C, C)
        "ss": jnp.stack(ss, 0),   # (4, C)
        "bs": jnp.stack(bs, 0),   # (4, C)
    }


def reference_forward(pos_2d, bone_angle, params):
    """Pure-JAX f32 reference mirroring the PyTorch forward (eval mode)."""
    B, V1, C1, N = pos_2d.shape
    _, V2, C2, _ = bone_angle.shape
    x = jnp.concatenate(
        [pos_2d.reshape(B, V1 * C1, N), bone_angle.reshape(B, V2 * C2, N)], axis=1
    )  # (B, Cin, N)
    channels = params["w0"].shape[0]

    h = jnp.einsum("oc,bcn->bon", params["w0"], x)
    h = jnp.maximum(h * params["s0"][None, :, None] + params["b0"][None, :, None], 0.0)
    for i in range(NUM_LAYERS):
        res = h
        for j in range(2):
            k = 2 * i + j
            h = jnp.einsum("oc,bcn->bon", params["ws"][k], h)
            h = jnp.maximum(
                h * params["ss"][k][None, :, None] + params["bs"][k][None, :, None], 0.0)
        h = res + h
    return h.reshape(B, channels // DIM, DIM, 1, N)


if __name__ == "__main__":
    # Small shapes consistent with the module's forward:
    # pos_2d (B, V1, C1, N), bone_angle (B, V2, C2, N); in_channels = V1*C1 + V2*C2.
    B, V1, C1, V2, C2, N = 2, 2, 2, 2, 3, 16
    in_channels = V1 * C1 + V2 * C2        # 10
    channels = 40                          # must be divisible by DIM=5

    key = jax.random.PRNGKey(0)
    k_pos, k_bone, k_param = jax.random.split(key, 3)
    pos_2d = jax.random.normal(k_pos, (B, V1, C1, N), jnp.float32)
    bone_angle = jax.random.normal(k_bone, (B, V2, C2, N), jnp.float32)
    params = make_params(k_param, in_channels, channels)

    # TODO(synk): dropout is identity (eval mode); training-mode BN batch stats not modeled.
    folded = fold_params_for_kernel(params, V1 * C1)   # folded once, not per call
    fwd = jax.jit(feature_model_forward)
    out = jax.block_until_ready(fwd(pos_2d, bone_angle, folded))

    ref = reference_forward(pos_2d, bone_angle, params)
    assert out.shape == (B, channels // DIM, DIM, 1, N), out.shape
    # bf16 MXU operands -> loosen tolerance vs the f32 reference
    rel_err = jnp.max(jnp.abs(out - ref)) / (jnp.max(jnp.abs(ref)) + 1e-8)
    assert float(rel_err) < 2e-2, f"mismatch vs reference (rel_err={float(rel_err)})"

    print("KERNEL_OK")
</pallas_src>

<mosaic_0001>
module attributes {stable_mosaic.version = 11 : i64} {
  func.func @_feature_kernel(%arg0: i32, %arg1: i32, %arg2: memref<1x4x16xf32, #tpu.memory_space<vmem>>, %arg3: memref<1x6x16xf32, #tpu.memory_space<vmem>>, %arg4: memref<40x4xbf16, #tpu.memory_space<vmem>>, %arg5: memref<40x6xbf16, #tpu.memory_space<vmem>>, %arg6: memref<40x1xf32, #tpu.memory_space<vmem>>, %arg7: memref<4x40x40xbf16, #tpu.memory_space<vmem>>, %arg8: memref<4x40x1xf32, #tpu.memory_space<vmem>>, %arg9: memref<1x40x16xf32, #tpu.memory_space<vmem>>) attributes {dimension_semantics = [#tpu.dimension_semantics<parallel>, #tpu.dimension_semantics<parallel>], iteration_bounds = array<i64: 2, 1>, scalar_prefetch = 0 : i64, scratch_operands = 0 : i64, tpu.core_type = #tpu.core_type<tc>, window_params = [{transform_indices = @transform_0, window_bounds = array<i64: 1, 4, 16>}, {transform_indices = @transform_1, window_bounds = array<i64: 1, 6, 16>}, {pipeline_mode = #tpu.pipeline_mode<synchronous>, transform_indices = @transform_2, window_bounds = array<i64: 40, 4>}, {pipeline_mode = #tpu.pipeline_mode<synchronous>, transform_indices = @transform_3, window_bounds = array<i64: 40, 6>}, {pipeline_mode = #tpu.pipeline_mode<synchronous>, transform_indices = @transform_4, window_bounds = array<i64: 40, 1>}, {pipeline_mode = #tpu.pipeline_mode<synchronous>, transform_indices = @transform_5, window_bounds = array<i64: 4, 40, 40>}, {pipeline_mode = #tpu.pipeline_mode<synchronous>, transform_indices = @transform_6, window_bounds = array<i64: 4, 40, 1>}, {transform_indices = @transform_7, window_bounds = array<i64: 1, 40, 16>}]} {
    %c0 = arith.constant 0 : index
    %c0_0 = arith.constant 0 : index
    %0 = vector.load %arg4[%c0, %c0_0] : memref<40x4xbf16, #tpu.memory_space<vmem>>, vector<40x4xbf16>
    %c0_1 = arith.constant 0 : index
    %c0_2 = arith.constant 0 : index
    %1 = vector.load %arg5[%c0_1, %c0_2] : memref<40x6xbf16, #tpu.memory_space<vmem>>, vector<40x6xbf16>
    %c0_3 = arith.constant 0 : index
    %c0_4 = arith.constant 0 : index
    %2 = vector.load %arg6[%c0_3, %c0_4] : memref<40x1xf32, #tpu.memory_space<vmem>>, vector<40x1xf32>
    %c0_5 = arith.constant 0 : index
    %c0_6 = arith.constant 0 : index
    %c0_7 = arith.constant 0 : index
    %3 = vector.load %arg7[%c0_5, %c0_6, %c0_7] : memref<4x40x40xbf16, #tpu.memory_space<vmem>>, vector<1x40x40xbf16>
    %4 = vector.shape_cast %3 : vector<1x40x40xbf16> to vector<40x40xbf16>
    %c1 = arith.constant 1 : index
    %c0_8 = arith.constant 0 : index
    %c0_9 = arith.constant 0 : index
    %5 = vector.load %arg7[%c1, %c0_8, %c0_9] : memref<4x40x40xbf16, #tpu.memory_space<vmem>>, vector<1x40x40xbf16>
    %6 = vector.shape_cast %5 : vector<1x40x40xbf16> to vector<40x40xbf16>
    %c2 = arith.constant 2 : index
    %c0_10 = arith.constant 0 : index
    %c0_11 = arith.constant 0 : index
    %7 = vector.load %arg7[%c2, %c0_10, %c0_11] : memref<4x40x40xbf16, #tpu.memory_space<vmem>>, vector<1x40x40xbf16>
    %8 = vector.shape_cast %7 : vector<1x40x40xbf16> to vector<40x40xbf16>
    %c3 = arith.constant 3 : index
    %c0_12 = arith.constant 0 : index
    %c0_13 = arith.constant 0 : index
    %9 = vector.load %arg7[%c3, %c0_12, %c0_13] : memref<4x40x40xbf16, #tpu.memory_space<vmem>>, vector<1x40x40xbf16>
    %10 = vector.shape_cast %9 : vector<1x40x40xbf16> to vector<40x40xbf16>
    %c0_14 = arith.constant 0 : index
    %c0_15 = arith.constant 0 : index
    %c0_16 = arith.constant 0 : index
    %11 = vector.load %arg8[%c0_14, %c0_15, %c0_16] : memref<4x40x1xf32, #tpu.memory_space<vmem>>, vector<1x40x1xf32>
    %12 = vector.shape_cast %11 : vector<1x40x1xf32> to vector<40x1xf32>
    %c1_17 = arith.constant 1 : index
    %c0_18 = arith.constant 0 : index
    %c0_19 = arith.constant 0 : index
    %13 = vector.load %arg8[%c1_17, %c0_18, %c0_19] : memref<4x40x1xf32, #tpu.memory_space<vmem>>, vector<1x40x1xf32>
    %14 = vector.shape_cast %13 : vector<1x40x1xf32> to vector<40x1xf32>
    %c2_20 = arith.constant 2 : index
    %c0_21 = arith.constant 0 : index
    %c0_22 = arith.constant 0 : index
    %15 = vector.load %arg8[%c2_20, %c0_21, %c0_22] : memref<4x40x1xf32, #tpu.memory_space<vmem>>, vector<1x40x1xf32>
    %16 = vector.shape_cast %15 : vector<1x40x1xf32> to vector<40x1xf32>
    %c3_23 = arith.constant 3 : index
    %c0_24 = arith.constant 0 : index
    %c0_25 = arith.constant 0 : index
    %17 = vector.load %arg8[%c3_23, %c0_24, %c0_25] : memref<4x40x1xf32, #tpu.memory_space<vmem>>, vector<1x40x1xf32>
    %18 = vector.shape_cast %17 : vector<1x40x1xf32> to vector<40x1xf32>
    %c0_26 = arith.constant 0 : index
    %c0_27 = arith.constant 0 : index
    %c0_28 = arith.constant 0 : index
    %19 = vector.load %arg2[%c0_26, %c0_27, %c0_28] : memref<1x4x16xf32, #tpu.memory_space<vmem>>, vector<1x4x16xf32>
    %20 = vector.shape_cast %19 : vector<1x4x16xf32> to vector<4x16xf32>
    %21 = arith.truncf %20 : vector<4x16xf32> to vector<4x16xbf16>
    %c0_29 = arith.constant 0 : index
    %c0_30 = arith.constant 0 : index
    %c0_31 = arith.constant 0 : index
    %22 = vector.load %arg3[%c0_29, %c0_30, %c0_31] : memref<1x6x16xf32, #tpu.memory_space<vmem>>, vector<1x6x16xf32>
    %23 = vector.shape_cast %22 : vector<1x6x16xf32> to vector<6x16xf32>
    %24 = arith.truncf %23 : vector<6x16xf32> to vector<6x16xbf16>
    %cst = arith.constant dense<0.000000e+00> : vector<40x16xf32>
    %25 = tpu.matmul %0, %21, %cst {dimension_numbers = #tpu.dot_dimension_numbers<[1], [0], [0], [1], [0, 0, 1, 1], [], []>} : vector<40x4xbf16>, vector<4x16xbf16>, vector<40x16xf32> -> vector<40x16xf32>
    %cst_32 = arith.constant dense<0.000000e+00> : vector<40x16xf32>
    %26 = tpu.matmul %1, %24, %cst_32 {dimension_numbers = #tpu.dot_dimension_numbers<[1], [0], [0], [1], [0, 0, 1, 1], [], []>} : vector<40x6xbf16>, vector<6x16xbf16>, vector<40x16xf32> -> vector<40x16xf32>
    %27 = arith.addf %25, %26 : vector<40x16xf32>
    %28 = vector.broadcast %2 : vector<40x1xf32> to vector<40x16xf32>
    %29 = arith.addf %27, %28 : vector<40x16xf32>
    %cst_33 = arith.constant 0.000000e+00 : f32
    %30 = vector.broadcast %cst_33 : f32 to vector<40x16xf32>
    %31 = arith.maximumf %29, %30 : vector<40x16xf32>
    %32 = arith.truncf %31 : vector<40x16xf32> to vector<40x16xbf16>
    %cst_34 = arith.constant dense<0.000000e+00> : vector<40x16xf32>
    %33 = tpu.matmul %4, %32, %cst_34 {dimension_numbers = #tpu.dot_dimension_numbers<[1], [0], [0], [1], [0, 0, 1, 1], [], []>} : vector<40x40xbf16>, vector<40x16xbf16>, vector<40x16xf32> -> vector<40x16xf32>
    %34 = vector.broadcast %12 : vector<40x1xf32> to vector<40x16xf32>
    %35 = arith.addf %33, %34 : vector<40x16xf32>
    %cst_35 = arith.constant 0.000000e+00 : f32
    %36 = vector.broadcast %cst_35 : f32 to vector<40x16xf32>
    %37 = arith.maximumf %35, %36 : vector<40x16xf32>
    %38 = arith.truncf %37 : vector<40x16xf32> to vector<40x16xbf16>
    %cst_36 = arith.constant dense<0.000000e+00> : vector<40x16xf32>
    %39 = tpu.matmul %6, %38, %cst_36 {dimension_numbers = #tpu.dot_dimension_numbers<[1], [0], [0], [1], [0, 0, 1, 1], [], []>} : vector<40x40xbf16>, vector<40x16xbf16>, vector<40x16xf32> -> vector<40x16xf32>
    %40 = vector.broadcast %14 : vector<40x1xf32> to vector<40x16xf32>
    %41 = arith.addf %39, %40 : vector<40x16xf32>
    %cst_37 = arith.constant 0.000000e+00 : f32
    %42 = vector.broadcast %cst_37 : f32 to vector<40x16xf32>
    %43 = arith.maximumf %41, %42 : vector<40x16xf32>
    %44 = arith.addf %31, %43 : vector<40x16xf32>
    %45 = arith.truncf %44 : vector<40x16xf32> to vector<40x16xbf16>
    %cst_38 = arith.constant dense<0.000000e+00> : vector<40x16xf32>
    %46 = tpu.matmul %8, %45, %cst_38 {dimension_numbers = #tpu.dot_dimension_numbers<[1], [0], [0], [1], [0, 0, 1, 1], [], []>} : vector<40x40xbf16>, vector<40x16xbf16>, vector<40x16xf32> -> vector<40x16xf32>
    %47 = vector.broadcast %16 : vector<40x1xf32> to vector<40x16xf32>
    %48 = arith.addf %46, %47 : vector<40x16xf32>
    %cst_39 = arith.constant 0.000000e+00 : f32
    %49 = vector.broadcast %cst_39 : f32 to vector<40x16xf32>
    %50 = arith.maximumf %48, %49 : vector<40x16xf32>
    %51 = arith.truncf %50 : vector<40x16xf32> to vector<40x16xbf16>
    %cst_40 = arith.constant dense<0.000000e+00> : vector<40x16xf32>
    %52 = tpu.matmul %10, %51, %cst_40 {dimension_numbers = #tpu.dot_dimension_numbers<[1], [0], [0], [1], [0, 0, 1, 1], [], []>} : vector<40x40xbf16>, vector<40x16xbf16>, vector<40x16xf32> -> vector<40x16xf32>
    %53 = vector.broadcast %18 : vector<40x1xf32> to vector<40x16xf32>
    %54 = arith.addf %52, %53 : vector<40x16xf32>
    %cst_41 = arith.constant 0.000000e+00 : f32
    %55 = vector.broadcast %cst_41 : f32 to vector<40x16xf32>
    %56 = arith.maximumf %54, %55 : vector<40x16xf32>
    %57 = arith.addf %44, %56 : vector<40x16xf32>
    %c0_42 = arith.constant 0 : index
    %c0_43 = arith.constant 0 : index
    %c0_44 = arith.constant 0 : index
    %58 = vector.load %arg9[%c0_42, %c0_43, %c0_44] : memref<1x40x16xf32, #tpu.memory_space<vmem>>, vector<1x40x16xf32>
    %59 = vector.shape_cast %58 : vector<1x40x16xf32> to vector<40x16xf32>
    %60 = vector.shape_cast %57 : vector<40x16xf32> to vector<1x40x16xf32>
    tpu.vector_store %arg9[%c0_42, %c0_43, %c0_44], %60 {strides = array<i32>} : memref<1x40x16xf32, #tpu.memory_space<vmem>>, vector<1x40x16xf32>,
    return
  }
  func.func @transform_0(%arg0: i32, %arg1: i32) -> (i32, i32, i32) {
    %c0_i32 = arith.constant 0 : i32
    %c0_i32_0 = arith.constant 0 : i32
    return %arg0, %c0_i32, %arg1 : i32, i32, i32
  }
  func.func @transform_1(%arg0: i32, %arg1: i32) -> (i32, i32, i32) {
    %c0_i32 = arith.constant 0 : i32
    %c0_i32_0 = arith.constant 0 : i32
    return %arg0, %c0_i32, %arg1 : i32, i32, i32
  }
  func.func @transform_2(%arg0: i32, %arg1: i32) -> (i32, i32) {
    %c0_i32 = arith.constant 0 : i32
    %c0_i32_0 = arith.constant 0 : i32
    %c0_i32_1 = arith.constant 0 : i32
    return %c0_i32, %c0_i32_0 : i32, i32
  }
  func.func @transform_3(%arg0: i32, %arg1: i32) -> (i32, i32) {
    %c0_i32 = arith.constant 0 : i32
    %c0_i32_0 = arith.constant 0 : i32
    %c0_i32_1 = arith.constant 0 : i32
    return %c0_i32, %c0_i32_0 : i32, i32
  }
  func.func @transform_4(%arg0: i32, %arg1: i32) -> (i32, i32) {
    %c0_i32 = arith.constant 0 : i32
    %c0_i32_0 = arith.constant 0 : i32
    %c0_i32_1 = arith.constant 0 : i32
    return %c0_i32, %c0_i32_0 : i32, i32
  }
  func.func @transform_5(%arg0: i32, %arg1: i32) -> (i32, i32, i32) {
    %c0_i32 = arith.constant 0 : i32
    %c0_i32_0 = arith.constant 0 : i32
    %c0_i32_1 = arith.constant 0 : i32
    %c0_i32_2 = arith.constant 0 : i32
    return %c0_i32, %c0_i32_0, %c0_i32_1 : i32, i32, i32
  }
  func.func @transform_6(%arg0: i32, %arg1: i32) -> (i32, i32, i32) {
    %c0_i32 = arith.constant 0 : i32
    %c0_i32_0 = arith.constant 0 : i32
    %c0_i32_1 = arith.constant 0 : i32
    %c0_i32_2 = arith.constant 0 : i32
    return %c0_i32, %c0_i32_0, %c0_i32_1 : i32, i32, i32
  }
  func.func @transform_7(%arg0: i32, %arg1: i32) -> (i32, i32, i32) {
    %c0_i32 = arith.constant 0 : i32
    %c0_i32_0 = arith.constant 0 : i32
    return %arg0, %c0_i32, %arg1 : i32, i32, i32
  }
}

</mosaic_0001>

<llo_original>
// kernel: feature_model_forward.1
$region0: #{feature_model_forward.1}
  #allocation0 [shape = 'u32[]', space=smem, size = 0x4, offset = 0x4, fixed_abs, tag = 'smem constant byte address 0x4 - core index']
  #allocation1 [shape = 'u32[144,128]{1,0:T(1,128)}', space=vmem, size = 0x12000, scoped, tag = 'internal scratch']
  %s0 = inlined_call_operand.vmem [shape: f32[2,4,16], index: 0, kind: input, shape index: {}]
  %s1 = inlined_call_operand.vmem [shape: f32[2,6,16], index: 1, kind: input, shape index: {}]
  %s2 = inlined_call_operand.vmem [shape: bf16[40,4], index: 2, kind: input, shape index: {}]
  %s3 = inlined_call_operand.vmem [shape: bf16[40,6], index: 3, kind: input, shape index: {}]
  %s4 = inlined_call_operand.vmem [shape: f32[40,1], index: 4, kind: input, shape index: {}]
  %s5 = inlined_call_operand.vmem [shape: bf16[4,40,40], index: 5, kind: input, shape index: {}]
  %s6 = inlined_call_operand.vmem [shape: f32[4,40,1], index: 6, kind: input, shape index: {}]
  %s7 = inlined_call_operand.vmem [shape: f32[2,40,16], index: 7, kind: output, shape index: {}]
  %s8 = sld [smem:[#allocation0]]
  $region61: #{feature_model_forward.1} parent=0
    _
  %s10 = ssub.s32 1, %s8
  %s11 = scalar_select 0, %s10, %s8
  loop: start=0, step=1, limit=4
  $region2: #{feature_model_forward.1} parent=0 // loop_pre_header
    _
  $region3: #{feature_model_forward.1} parent=0 // loop_header
    %s13 = sphi 0, %s17
    %p14 = scmp.ge.s32.totalorder %s13, 4
    %s20 = sphi 0, %s32
    %s21 = sphi 0, %s28
    %s22 = sphi 0, %s20
    %s23 = sphi 0, %s21
    %s24 = sphi 0, %s22
    %s25 = sphi 0, %s23
    %s37 = sphi 0, %s39
    %s40 = sphi 0, %s37
    %s41 = sphi 0, %s40
    %s57 = sphi 0, %s41
    %s65 = sphi 0, %s67
    %s68 = sphi 0, %s65
    %s69 = sphi 0, %s68
    %s85 = sphi 0, %s69
    %s89 = sphi 0, %s89
    %s91 = sphi 0, %s89
    %s92 = sphi 0, %s91
    %s106 = sphi 0, %s92
    %s110 = sphi 0, %s110
    %s112 = sphi 0, %s110
    %s113 = sphi 0, %s112
    %s127 = sphi 0, %s113
    %s131 = sphi 0, %s131
    %s133 = sphi 0, %s131
    %s134 = sphi 0, %s133
    %s148 = sphi 0, %s134
    %s152 = sphi 0, %s152
    %s154 = sphi 0, %s152
    %s155 = sphi 0, %s154
    %s169 = sphi 0, %s155
    %s173 = sphi 0, %s173
    %s175 = sphi 0, %s173
    %s176 = sphi 0, %s175
    %s190 = sphi 0, %s176
    %s198 = sphi 0, %s200
    %s201 = sphi 0, %s198
    %s202 = sphi 0, %s201
    %s218 = sphi 0, %s202
  $region4: #{feature_model_forward.1} parent=0 // loop_header_branch
    %16 = sbr.rel (%p14) target = $region8
  $region5: #{feature_model_forward.1} parent=0 // loop_body
    %s18 = ssub.s32 %s13, 1
    %s19 = ssub.s32 %s13, 2
    %s26 = sadd.s32 1, %s21
    %p27 = scmp.ge.s32.totalorder %s26, 1
    %s28 = scalar_select %p27, 0, %s26
    %s29 = sadd.s32 1, %s20
    %s30 = scalar_select %p27, %s29, %s20
    %p31 = scmp.ge.s32.totalorder %s30, 2
    %s32 = scalar_select %p31, 0, %s30
    %s33 = ssub.s32 %s20, %s32
    %s34 = ssub.s32 %s21, %s28
    %s35 = sor.u32 %s33, %s34
    %p36 = scmp.eq.s32.totalorder %s35, 0
    %s38 = sadd.s32 %s37, 1
    %s39 = scalar_select %p36, %s37, %s38
    %p42 = pneg %p36
    %p43 = scmp.eq.s32.totalorder %s13, 1
    %p44 = por %p42, %p43
    %p45 = scmp.ne.s32.totalorder %s37, %s40
    %p46 = scmp.eq.s32.totalorder %s13, 0
    %p47 = por %p45, %p46
    %p48 = scmp.ne.s32.totalorder %s37, %s40
    %p49 = scmp.eq.s32.totalorder %s18, 1
    %p50 = por %p48, %p49
    %p51 = scmp.ne.s32.totalorder %s40, %s41
    %p52 = scmp.eq.s32.totalorder %s18, 0
    %p53 = por %p51, %p52
    %p54 = scmp.ne.s32.totalorder %s40, %s41
    %p55 = scmp.eq.s32.totalorder %s19, 1
    %p56 = por %p54, %p55
    %p58 = scmp.ne.s32.totalorder %s41, %s57
    %p59 = scmp.eq.s32.totalorder %s19, 0
    %p60 = por %p58, %p59
    %s61 = ssub.s32 %s20, %s32
    %s62 = ssub.s32 %s21, %s28
    %s63 = sor.u32 %s61, %s62
    %p64 = scmp.eq.s32.totalorder %s63, 0
    %s66 = sadd.s32 %s65, 1
    %s67 = scalar_select %p64, %s65, %s66
    %p70 = pneg %p64
    %p71 = scmp.eq.s32.totalorder %s13, 1
    %p72 = por %p70, %p71
    %p73 = scmp.ne.s32.totalorder %s65, %s68
    %p74 = scmp.eq.s32.totalorder %s13, 0
    %p75 = por %p73, %p74
    %p76 = scmp.ne.s32.totalorder %s65, %s68
    %p77 = scmp.eq.s32.totalorder %s18, 1
    %p78 = por %p76, %p77
    %p79 = scmp.ne.s32.totalorder %s68, %s69
    %p80 = scmp.eq.s32.totalorder %s18, 0
    %p81 = por %p79, %p80
    %p82 = scmp.ne.s32.totalorder %s68, %s69
    %p83 = scmp.eq.s32.totalorder %s19, 1
    %p84 = por %p82, %p83
    %p86 = scmp.ne.s32.totalorder %s69, %s85
    %p87 = scmp.eq.s32.totalorder %s19, 0
    %p88 = por %p86, %p87
    %s90 = sadd.s32 %s89, 1
    %p93 = scmp.eq.s32.totalorder %s13, 1
    %p94 = scmp.ne.s32.totalorder %s89, %s91
    %p95 = scmp.eq.s32.totalorder %s13, 0
    %p96 = por %p94, %p95
    %p97 = scmp.ne.s32.totalorder %s89, %s91
    %p98 = scmp.eq.s32.totalorder %s18, 1
    %p99 = por %p97, %p98
    %p100 = scmp.ne.s32.totalorder %s91, %s92
    %p101 = scmp.eq.s32.totalorder %s18, 0
    %p102 = por %p100, %p101
    %p103 = scmp.ne.s32.totalorder %s91, %s92
    %p104 = scmp.eq.s32.totalorder %s19, 1
    %p105 = por %p103, %p104
    %p107 = scmp.ne.s32.totalorder %s92, %s106
    %p108 = scmp.eq.s32.totalorder %s19, 0
    %p109 = por %p107, %p108
    %s111 = sadd.s32 %s110, 1
    %p114 = scmp.eq.s32.totalorder %s13, 1
    %p115 = scmp.ne.s32.totalorder %s110, %s112
    %p116 = scmp.eq.s32.totalorder %s13, 0
    %p117 = por %p115, %p116
    %p118 = scmp.ne.s32.totalorder %s110, %s112
    %p119 = scmp.eq.s32.totalorder %s18, 1
    %p120 = por %p118, %p119
    %p121 = scmp.ne.s32.totalorder %s112, %s113
    %p122 = scmp.eq.s32.totalorder %s18, 0
    %p123 = por %p121, %p122
    %p124 = scmp.ne.s32.totalorder %s112, %s113
    %p125 = scmp.eq.s32.totalorder %s19, 1
    %p126 = por %p124, %p125
    %p128 = scmp.ne.s32.totalorder %s113, %s127
    %p129 = scmp.eq.s32.totalorder %s19, 0
    %p130 = por %p128, %p129
    %s132 = sadd.s32 %s131, 1
    %p135 = scmp.eq.s32.totalorder %s13, 1
    %p136 = scmp.ne.s32.totalorder %s131, %s133
    %p137 = scmp.eq.s32.totalorder %s13, 0
    %p138 = por %p136, %p137
    %p139 = scmp.ne.s32.totalorder %s131, %s133
    %p140 = scmp.eq.s32.totalorder %s18, 1
    %p141 = por %p139, %p140
    %p142 = scmp.ne.s32.totalorder %s133, %s134
    %p143 = scmp.eq.s32.totalorder %s18, 0
    %p144 = por %p142, %p143
    %p145 = scmp.ne.s32.totalorder %s133, %s134
    %p146 = scmp.eq.s32.totalorder %s19, 1
    %p147 = por %p145, %p146
    %p149 = scmp.ne.s32.totalorder %s134, %s148
    %p150 = scmp.eq.s32.totalorder %s19, 0
    %p151 = por %p149, %p150
    %s153 = sadd.s32 %s152, 1
    %p156 = scmp.eq.s32.totalorder %s13, 1
    %p157 = scmp.ne.s32.totalorder %s152, %s154
    %p158 = scmp.eq.s32.totalorder %s13, 0
    %p159 = por %p157, %p158
    %p160 = scmp.ne.s32.totalorder %s152, %s154
    %p161 = scmp.eq.s32.totalorder %s18, 1
    %p162 = por %p160, %p161
    %p163 = scmp.ne.s32.totalorder %s154, %s155
    %p164 = scmp.eq.s32.totalorder %s18, 0
    %p165 = por %p163, %p164
    %p166 = scmp.ne.s32.totalorder %s154, %s155
    %p167 = scmp.eq.s32.totalorder %s19, 1
    %p168 = por %p166, %p167
    %p170 = scmp.ne.s32.totalorder %s155, %s169
    %p171 = scmp.eq.s32.totalorder %s19, 0
    %p172 = por %p170, %p171
    %s174 = sadd.s32 %s173, 1
    %p177 = scmp.eq.s32.totalorder %s13, 1
    %p178 = scmp.ne.s32.totalorder %s173, %s175
    %p179 = scmp.eq.s32.totalorder %s13, 0
    %p180 = por %p178, %p179
    %p181 = scmp.ne.s32.totalorder %s173, %s175
    %p182 = scmp.eq.s32.totalorder %s18, 1
    %p183 = por %p181, %p182
    %p184 = scmp.ne.s32.totalorder %s175, %s176
    %p185 = scmp.eq.s32.totalorder %s18, 0
    %p186 = por %p184, %p185
    %p187 = scmp.ne.s32.totalorder %s175, %s176
    %p188 = scmp.eq.s32.totalorder %s19, 1
    %p189 = por %p187, %p188
    %p191 = scmp.ne.s32.totalorder %s176, %s190
    %p192 = scmp.eq.s32.totalorder %s19, 0
    %p193 = por %p191, %p192
    %s194 = ssub.s32 %s20, %s32
    %s195 = ssub.s32 %s21, %s28
    %s196 = sor.u32 %s194, %s195
    %p197 = scmp.eq.s32.totalorder %s196, 0
    %s199 = sadd.s32 %s198, 1
    %s200 = scalar_select %p197, %s198, %s199
    %p203 = pneg %p197
    %p204 = scmp.eq.s32.totalorder %s13, 1
    %p205 = por %p203, %p204
    %p206 = scmp.ne.s32.totalorder %s198, %s201
    %p207 = scmp.eq.s32.totalorder %s13, 0
    %p208 = por %p206, %p207
    %p209 = scmp.ne.s32.totalorder %s198, %s201
    %p210 = scmp.eq.s32.totalorder %s18, 1
    %p211 = por %p209, %p210
    %p212 = scmp.ne.s32.totalorder %s201, %s202
    %p213 = scmp.eq.s32.totalorder %s18, 0
    %p214 = por %p212, %p213
    %p215 = scmp.ne.s32.totalorder %s201, %s202
    %p216 = scmp.eq.s32.totalorder %s19, 1
    %p217 = por %p215, %p216
    %p219 = scmp.ne.s32.totalorder %s202, %s218
    %p220 = scmp.eq.s32.totalorder %s19, 0
    %p221 = por %p219, %p220
    %p222 = scmp.le.s32.totalorder 1, %s13
    %p223 = scmp.lt.s32.totalorder %s13, 3
    %p224 = pnand %p222, %p223
    %p225 = pneg %p224
    // Predicated region
    $region9: #{feature_model_forward.1} parent=5 // pred_check
      _
    $region10: #{feature_model_forward.1} parent=5 // pred_check_branch
      %227 = sbr.rel (%p224) target = $region12
    $region11: #{feature_model_forward.1} parent=5 // pred_region
      %s228 = ssub.s32 %s13, 1
      // Predicated region
      $region13: #{feature_model_forward.1} parent=11 // pred_check
        %p229 = pneg %p102
      $region14: #{feature_model_forward.1} parent=11 // pred_check_branch
        %231 = sbr.rel (%p229) target = $region16
      $region15: #{feature_model_forward.1} parent=11 // pred_region
        _
      $region16: #{feature_model_forward.1} parent=11 // pred_fallthru
        _
      // Predicated region
      $region17: #{feature_model_forward.1} parent=11 // pred_check
        %p232 = pneg %p123
      $region18: #{feature_model_forward.1} parent=11 // pred_check_branch
        %234 = sbr.rel (%p232) target = $region20
      $region19: #{feature_model_forward.1} parent=11 // pred_region
        _
      $region20: #{feature_model_forward.1} parent=11 // pred_fallthru
        _
      // Predicated region
      $region21: #{feature_model_forward.1} parent=11 // pred_check
        %p235 = pneg %p144
      $region22: #{feature_model_forward.1} parent=11 // pred_check_branch
        %237 = sbr.rel (%p235) target = $region24
      $region23: #{feature_model_forward.1} parent=11 // pred_region
        _
      $region24: #{feature_model_forward.1} parent=11 // pred_fallthru
        _
      // Predicated region
      $region25: #{feature_model_forward.1} parent=11 // pred_check
        %p238 = pneg %p165
      $region26: #{feature_model_forward.1} parent=11 // pred_check_branch
        %240 = sbr.rel (%p238) target = $region28
      $region27: #{feature_model_forward.1} parent=11 // pred_region
        _
      $region28: #{feature_model_forward.1} parent=11 // pred_fallthru
        _
      // Predicated region
      $region29: #{feature_model_forward.1} parent=11 // pred_check
        %p241 = pneg %p186
      $region30: #{feature_model_forward.1} parent=11 // pred_check_branch
        %243 = sbr.rel (%p241) target = $region32
      $region31: #{feature_model_forward.1} parent=11 // pred_region
        _
      $region32: #{feature_model_forward.1} parent=11 // pred_fallthru
        _
    $region12: #{feature_model_forward.1} parent=5 // pred_fallthru
      _
    %p244 = scmp.lt.s32.totalorder %s13, 2
    // Predicated region
    $region33: #{feature_model_forward.1} parent=5 // pred_check
      %p245 = pneg %p244
    $region34: #{feature_model_forward.1} parent=5 // pred_check_branch
      %247 = sbr.rel (%p245) target = $region36
    $region35: #{feature_model_forward.1} parent=5 // pred_region
      // Predicated region
      $region37: #{feature_model_forward.1} parent=35 // pred_check
        %p248 = pneg %p47
      $region38: #{feature_model_forward.1} parent=35 // pred_check_branch
        %250 = sbr.rel (%p248) target = $region40
      $region39: #{feature_model_forward.1} parent=35 // pred_region
        %p251 = scmp.lt.s32.totalorder %s20, 1
        %s252 = scalar_select %p251, %s20, 1
        %p253 = scmp.lt.s32.totalorder %s21, 0
        %s254 = scalar_select %p253, %s21, 0
        %s255 = sadd.s32 %s254, %s252
        %s256 = smul.addr %s255, 4
        %s257 = scalar_lea.vmem %s0, %s256
      $region40: #{feature_model_forward.1} parent=35 // pred_fallthru
        _
      // Predicated region
      $region41: #{feature_model_forward.1} parent=35 // pred_check
        %p258 = pneg %p75
      $region42: #{feature_model_forward.1} parent=35 // pred_check_branch
        %260 = sbr.rel (%p258) target = $region44
      $region43: #{feature_model_forward.1} parent=35 // pred_region
        %p261 = scmp.lt.s32.totalorder %s20, 1
        %s262 = scalar_select %p261, %s20, 1
        %p263 = scmp.lt.s32.totalorder %s21, 0
        %s264 = scalar_select %p263, %s21, 0
        %s265 = sadd.s32 %s264, %s262
        %s266 = smul.addr %s265, 8
        %s267 = scalar_lea.vmem %s1, %s266
      $region44: #{feature_model_forward.1} parent=35 // pred_fallthru
        _
    $region36: #{feature_model_forward.1} parent=5 // pred_fallthru
      _
    %p268 = scmp.le.s32.totalorder 1, %s13
    %p269 = scmp.lt.s32.totalorder %s13, 3
    %p270 = pnand %p268, %p269
    %p271 = pneg %p270
    // Predicated region
    $region45: #{feature_model_forward.1} parent=5 // pred_check
      _
    $region46: #{feature_model_forward.1} parent=5 // pred_check_branch
      %273 = sbr.rel (%p270) target = $region48
    $region47: #{feature_model_forward.1} parent=5 // pred_region
      %s274 = ssub.s32 %s13, 1
      %p275 = scmp.lt.s32.totalorder %s22, 1
      %s276 = scalar_select %p275, %s22, 1
      %p277 = scmp.lt.s32.totalorder %s23, 0
      %s278 = scalar_select %p277, %s23, 0
      %s279 = sadd.s32 %s278, %s276
      %s280 = smul.addr %s279, 4
      %s281 = scalar_lea.vmem %s0, %s280
      %p282 = pneg %p53
      %p283 = pneg %p50
      %p284 = scmp.lt.s32.totalorder %s22, 1
      %s285 = scalar_select %p284, %s22, 1
      %p286 = scmp.lt.s32.totalorder %s23, 0
      %s287 = scalar_select %p286, %s23, 0
      %s288 = sadd.s32 %s287, %s285
      %s289 = smul.addr %s288, 8
      %s290 = scalar_lea.vmem %s1, %s289
      %p291 = pneg %p81
      %p292 = pneg %p78
      %p293 = pneg %p102
      %p294 = pneg %p99
      %p295 = pneg %p123
      %p296 = pneg %p120
      %p297 = pneg %p144
      %p298 = pneg %p141
      %p299 = pneg %p165
      %p300 = pneg %p162
      %p301 = pneg %p186
      %p302 = pneg %p183
      %p303 = pneg %p214
      %p304 = pneg %p211
      %p305 = scmp.lt.s32.totalorder %s22, 1
      %s306 = scalar_select %p305, %s22, 1
      %p307 = scmp.lt.s32.totalorder %s23, 0
      %s308 = scalar_select %p307, %s23, 0
      %s309 = smul.addr %s306, 5
      %s310 = sadd.s32 %s308, %s309
      %s311 = smul.addr %s310, 8
      %s312 = scalar_lea.vmem %s7, %s311
      %p313 = scmp.lt.s32.totalorder %s22, 1
      %s314 = scalar_select %p313, %s22, 1
      %p315 = scmp.lt.s32.totalorder %s23, 0
      %s316 = scalar_select %p315, %s23, 0
      %s317 = sadd.s32 %s316, %s314
      %s318 = smul.addr %s317, 4
      %s319 = scalar_lea.vmem %s0, %s318
      %p320 = scmp.lt.s32.totalorder %s22, 1
      %s321 = scalar_select %p320, %s22, 1
      %p322 = scmp.lt.s32.totalorder %s23, 0
      %s323 = scalar_select %p322, %s23, 0
      %s324 = sadd.s32 %s323, %s321
      %s325 = smul.addr %s324, 8
      %s326 = scalar_lea.vmem %s1, %s325
      %p327 = scmp.lt.s32.totalorder %s22, 1
      %s328 = scalar_select %p327, %s22, 1
      %p329 = scmp.lt.s32.totalorder %s23, 0
      %s330 = scalar_select %p329, %s23, 0
      %s331 = smul.addr %s328, 5
      %s332 = sadd.s32 %s330, %s331
      %s333 = smul.addr %s332, 8
      %s334 = scalar_lea.vmem %s7, %s333
      %v336 = vld [vmem:[%s2] sm:$0xf]
      %v337 = vld [vmem:[%s2 + $0x4] sm:$0xf]
      %v338 = vld [vmem:[%s2 + $0x8] sm:$0xf]
      %v339 = vld [vmem:[%s2 + $0xc] sm:$0xf]
      %v340 = vld [vmem:[%s2 + $0x10] sm:$0xf]
      %v341 = vld [vmem:[%s3] sm:$0xf]
      %v342 = vld [vmem:[%s3 + $0x4] sm:$0xf]
      %v343 = vld [vmem:[%s3 + $0x8] sm:$0xf]
      %v344 = vld [vmem:[%s3 + $0xc] sm:$0xf]
      %v345 = vld [vmem:[%s3 + $0x10] sm:$0xf]
      %v346 = vld [vmem:[%s4] sm:$0xff]
      %v347 = vld [vmem:[%s4 + $0x8] sm:$0xff]
      %v348 = vld [vmem:[%s4 + $0x10] sm:$0xff]
      %v349 = vld [vmem:[%s4 + $0x18] sm:$0xff]
      %v350 = vld [vmem:[%s4 + $0x20] sm:$0xff]
      %v351 = vld [vmem:[%s5] sm:$0xf]
      %v352 = vld [vmem:[%s5 + $0x4] sm:$0xf]
      %v353 = vld [vmem:[%s5 + $0x8] sm:$0xf]
      %v354 = vld [vmem:[%s5 + $0xc] sm:$0xf]
      %v355 = vld [vmem:[%s5 + $0x10] sm:$0xf]
      %s356 = scalar_lea.vmem %s5, 20
      %v357 = vld [vmem:[%s356] sm:$0xf]
      %v358 = vld [vmem:[%s356 + $0x4] sm:$0xf]
      %v359 = vld [vmem:[%s356 + $0x8] sm:$0xf]
      %v360 = vld [vmem:[%s356 + $0xc] sm:$0xf]
      %v361 = vld [vmem:[%s356 + $0x10] sm:$0xf]
      %s362 = scalar_lea.vmem %s5, 40
      %v363 = vld [vmem:[%s362] sm:$0xf]
      %v364 = vld [vmem:[%s362 + $0x4] sm:$0xf]
      %v365 = vld [vmem:[%s362 + $0x8] sm:$0xf]
      %v366 = vld [vmem:[%s362 + $0xc] sm:$0xf]
      %v367 = vld [vmem:[%s362 + $0x10] sm:$0xf]
      %s368 = scalar_lea.vmem %s5, 60
      %v369 = vld [vmem:[%s368] sm:$0xf]
      %v370 = vld [vmem:[%s368 + $0x4] sm:$0xf]
      %v371 = vld [vmem:[%s368 + $0x8] sm:$0xf]
      %v372 = vld [vmem:[%s368 + $0xc] sm:$0xf]
      %v373 = vld [vmem:[%s368 + $0x10] sm:$0xf]
      %v374 = vld [vmem:[%s6] sm:$0xff]
      %v375 = vld [vmem:[%s6 + $0x8] sm:$0xff]
      %v376 = vld [vmem:[%s6 + $0x10] sm:$0xff]
      %v377 = vld [vmem:[%s6 + $0x18] sm:$0xff]
      %v378 = vld [vmem:[%s6 + $0x20] sm:$0xff]
      %s379 = scalar_lea.vmem %s6, 40
      %v380 = vld [vmem:[%s379] sm:$0xff]
      %v381 = vld [vmem:[%s379 + $0x8] sm:$0xff]
      %v382 = vld [vmem:[%s379 + $0x10] sm:$0xff]
      %v383 = vld [vmem:[%s379 + $0x18] sm:$0xff]
      %v384 = vld [vmem:[%s379 + $0x20] sm:$0xff]
      %s385 = scalar_lea.vmem %s6, 80
      %v386 = vld [vmem:[%s385] sm:$0xff]
      %v387 = vld [vmem:[%s385 + $0x8] sm:$0xff]
      %v388 = vld [vmem:[%s385 + $0x10] sm:$0xff]
      %v389 = vld [vmem:[%s385 + $0x18] sm:$0xff]
      %v390 = vld [vmem:[%s385 + $0x20] sm:$0xff]
      %s391 = scalar_lea.vmem %s6, 120
      %v392 = vld [vmem:[%s391] sm:$0xff]
      %v393 = vld [vmem:[%s391 + $0x8] sm:$0xff]
      %v394 = vld [vmem:[%s391 + $0x10] sm:$0xff]
      %v395 = vld [vmem:[%s391 + $0x18] sm:$0xff]
      %v396 = vld [vmem:[%s391 + $0x20] sm:$0xff]
      %v397 = vld [vmem:[%s319] sm:$0xf]
      %v398 = vpack.c.bf16 %v397, %v397
      %v399 = vld [vmem:[%s326] sm:$0x3f]
      %v400 = vpack.c.bf16 %v399, %v399
      %v406 = vunpack.c.l.b16 %v341
      %v407 = vunpack.c.l.b16 %v342
      %v408 = vunpack.c.l.b16 %v343
      %v409 = vunpack.c.l.b16 %v344
      %v410 = vunpack.c.l.b16 %v345
      %v411 = vpack.c.b16 %v407, %v406
      %v412 = vpack.c.b16 %v409, %v408
      %v413 = vpack.c.b16 %v410, %v410
      %vm414 = vcmask 48128
      %v416 = vsel %vm414, %v411, 0
      %v419 = vsel %vm414, %v412, 0
      %v422 = vsel %vm414, %v413, 0
      %vm424 = vcmask 1042432
      %v426 = vsel %vm424, %v400, 0
      %428 = vmatprep.subr.bf16.mxu0 0
      %429 = vmatpush1.bf16.msra.mxu0 %v426
      %430 = vmatprep.subr.bf16.mxu0 0
      %431 = vmatpush1.bf16.msra.mxu0 0
      %432 = vmatprep.subr.bf16.mxu0 0
      %433 = vmatpush1.bf16.msra.mxu0 0
      %434 = vmatprep.subr.bf16.mxu0 0
      %435 = vmatpush1.bf16.msra.mxu0 0
      %436 = vmatprep.subr.bf16.mxu0 0
      %437 = vmatpush1.bf16.msra.mxu0 0
      %438 = vmatprep.subr.bf16.mxu0 0
      %439 = vmatpush1.bf16.msra.mxu0 0
      %440 = vmatprep.subr.bf16.mxu0 0
      %441 = vmatpush1.bf16.msra.mxu0 0
      %442 = vmatprep.subr.bf16.mxu0 0
      %443 = vmatpush1.bf16.msra.mxu0 0
      %444 = vmatprep.subr.bf16.mxu0 0
      %445 = vmatpush1.bf16.msra.mxu0 0
      %446 = vmatprep.subr.bf16.mxu0 0
      %447 = vmatpush1.bf16.msra.mxu0 0
      %448 = vmatprep.subr.bf16.mxu0 0
      %449 = vmatpush1.bf16.msra.mxu0 0
      %450 = vmatprep.subr.bf16.mxu0 0
      %451 = vmatpush1.bf16.msra.mxu0 0
      %452 = vmatprep.subr.bf16.mxu0 0
      %453 = vmatpush1.bf16.msra.mxu0 0
      %454 = vmatprep.subr.bf16.mxu0 0
      %455 = vmatpush1.bf16.msra.mxu0 0
      %456 = vmatprep.subr.bf16.mxu0 0
      %457 = vmatpush1.bf16.msra.mxu0 0
      %458 = vmatprep.subr.bf16.mxu0 0
      %459 = vmatpush1.bf16.msra.mxu0 0
      %460 = vmatprep.mubr.bf16.mxu0 0
      %461 = vmatmul.mubr.bf16.gmra.mrb[0].mxu0 %v416
      %v462 = vpop.f32.mrb[0].mxu0
      %v463 = vadd.f32 0.0, %v462
      %v464 = vpop.f32.mrb[0].mxu0
      %v465 = vpop.f32.mrb[0].mxu0
      %v466 = vadd.f32 0.0, %v465
      %v467 = vpop.f32.mrb[0].mxu0
      %468 = vmatprep.mubr.bf16.mxu0 0
      %469 = vmatmul.mubr.bf16.gmra.mrb[0].mxu0 %v419
      %v470 = vpop.f32.mrb[0].mxu0
      %v471 = vadd.f32 0.0, %v470
      %v472 = vpop.f32.mrb[0].mxu0
      %v473 = vpop.f32.mrb[0].mxu0
      %v474 = vadd.f32 0.0, %v473
      %v475 = vpop.f32.mrb[0].mxu0
      %476 = vmatprep.mubr.bf16.mxu0 0
      %477 = vmatmul.mubr.bf16.gmra.mrb[0].mxu0 %v422
      %v478 = vpop.f32.mrb[0].mxu0
      %v479 = vadd.f32 0.0, %v478
      %v480 = vpop.f32.mrb[0].mxu0
      %v481 = vpop.f32.mrb[0].mxu0
      %v482 = vpop.f32.mrb[0].mxu0
      %483 = vdwg.mxu0
      %v489 = vunpack.c.l.b16 %v336
      %v490 = vunpack.c.l.b16 %v337
      %v491 = vunpack.c.l.b16 %v338
      %v492 = vunpack.c.l.b16 %v339
      %v493 = vunpack.c.l.b16 %v340
      %v494 = vpack.c.b16 %v490, %v489
      %v495 = vpack.c.b16 %v492, %v491
      %v496 = vpack.c.b16 %v493, %v493
      %vm497 = vcmask 31744
      %v499 = vsel %vm497, %v494, 0
      %v502 = vsel %vm497, %v495, 0
      %v505 = vsel %vm497, %v496, 0
      %vm507 = vcmask 1041408
      %v509 = vsel %vm507, %v398, 0
      %511 = vmatprep.subr.bf16.mxu0 0
      %512 = vmatpush1.bf16.msra.mxu0 %v509
      %513 = vmatprep.subr.bf16.mxu0 0
      %514 = vmatpush1.bf16.msra.mxu0 0
      %515 = vmatprep.subr.bf16.mxu0 0
      %516 = vmatpush1.bf16.msra.mxu0 0
      %517 = vmatprep.subr.bf16.mxu0 0
      %518 = vmatpush1.bf16.msra.mxu0 0
      %519 = vmatprep.subr.bf16.mxu0 0
      %520 = vmatpush1.bf16.msra.mxu0 0
      %521 = vmatprep.subr.bf16.mxu0 0
      %522 = vmatpush1.bf16.msra.mxu0 0
      %523 = vmatprep.subr.bf16.mxu0 0
      %524 = vmatpush1.bf16.msra.mxu0 0
      %525 = vmatprep.subr.bf16.mxu0 0
      %526 = vmatpush1.bf16.msra.mxu0 0
      %527 = vmatprep.subr.bf16.mxu0 0
      %528 = vmatpush1.bf16.msra.mxu0 0
      %529 = vmatprep.subr.bf16.mxu0 0
      %530 = vmatpush1.bf16.msra.mxu0 0
      %531 = vmatprep.subr.bf16.mxu0 0
      %532 = vmatpush1.bf16.msra.mxu0 0
      %533 = vmatprep.subr.bf16.mxu0 0
      %534 = vmatpush1.bf16.msra.mxu0 0
      %535 = vmatprep.subr.bf16.mxu0 0
      %536 = vmatpush1.bf16.msra.mxu0 0
      %537 = vmatprep.subr.bf16.mxu0 0
      %538 = vmatpush1.bf16.msra.mxu0 0
      %539 = vmatprep.subr.bf16.mxu0 0
      %540 = vmatpush1.bf16.msra.mxu0 0
      %541 = vmatprep.subr.bf16.mxu0 0
      %542 = vmatpush1.bf16.msra.mxu0 0
      %543 = vmatprep.mubr.bf16.mxu0 0
      %544 = vmatmul.mubr.bf16.gmra.mrb[0].mxu0 %v499
      %v545 = vpop.f32.mrb[0].mxu0
      %v546 = vadd.f32 %v463, %v545
      %v547 = vpop.f32.mrb[0].mxu0
      %v548 = vpop.f32.mrb[0].mxu0
      %v549 = vadd.f32 %v466, %v548
      %v550 = vpop.f32.mrb[0].mxu0
      %551 = vmatprep.mubr.bf16.mxu0 0
      %552 = vmatmul.mubr.bf16.gmra.mrb[0].mxu0 %v502
      %v553 = vpop.f32.mrb[0].mxu0
      %v554 = vadd.f32 %v471, %v553
      %v555 = vpop.f32.mrb[0].mxu0
      %v556 = vpop.f32.mrb[0].mxu0
      %v557 = vadd.f32 %v474, %v556
      %v558 = vpop.f32.mrb[0].mxu0
      %559 = vmatprep.mubr.bf16.mxu0 0
      %560 = vmatmul.mubr.bf16.gmra.mrb[0].mxu0 %v505
      %v561 = vpop.f32.mrb[0].mxu0
      %v562 = vadd.f32 %v479, %v561
      %v563 = vpop.f32.mrb[0].mxu0
      %v564 = vpop.f32.mrb[0].mxu0
      %v565 = vpop.f32.mrb[0].mxu0
      %566 = vdwg.mxu0
      %568 = vset.pattern.permute.xlu0 0
      %569 = vperm.xlu0 %568, %v346
      %v570 = vpop.permute.xlu0 %569
      %573 = vset.pattern.permute.xlu0 0
      %574 = vperm.xlu0 %573, %v347
      %v575 = vpop.permute.xlu0 %574
      %578 = vset.pattern.permute.xlu0 0
      %579 = vperm.xlu0 %578, %v348
      %v580 = vpop.permute.xlu0 %579
      %583 = vset.pattern.permute.xlu0 0
      %584 = vperm.xlu0 %583, %v349
      %v585 = vpop.permute.xlu0 %584
      %588 = vset.pattern.permute.xlu0 0
      %589 = vperm.xlu0 %588, %v350
      %v590 = vpop.permute.xlu0 %589
      %v592 = vadd.f32 %v546, %v570
      %v593 = vadd.f32 %v549, %v575
      %v594 = vadd.f32 %v554, %v580
      %v595 = vadd.f32 %v557, %v585
      %v596 = vadd.f32 %v562, %v590
      %v597 = vmax.f32 %v592, 0.0
      %v598 = vmax.f32 %v593, 0.0
      %v599 = vmax.f32 %v594, 0.0
      %v600 = vmax.f32 %v595, 0.0
      %v601 = vmax.f32 %v596, 0.0
      %v602 = vpack.c.bf16 %v598, %v597
      %v603 = vpack.c.bf16 %v600, %v599
      %v604 = vpack.c.bf16 %v601, %v601
      %606 = vset.pattern.permute.xlu0 0
      %607 = vperm.xlu0 %606, %v374
      %v608 = vpop.permute.xlu0 %607
      %611 = vset.pattern.permute.xlu0 0
      %612 = vperm.xlu0 %611, %v375
      %v613 = vpop.permute.xlu0 %612
      %616 = vset.pattern.permute.xlu0 0
      %617 = vperm.xlu0 %616, %v376
      %v618 = vpop.permute.xlu0 %617
      %621 = vset.pattern.permute.xlu0 0
      %622 = vperm.xlu0 %621, %v377
      %v623 = vpop.permute.xlu0 %622
      %626 = vset.pattern.permute.xlu0 0
      %627 = vperm.xlu0 %626, %v378
      %v628 = vpop.permute.xlu0 %627
      %v635 = vunpack.c.l.b16 %v351
      %v636 = vunpack.c.l.b16 %v352
      %v637 = vunpack.c.l.b16 %v353
      %v638 = vunpack.c.l.b16 %v354
      %v639 = vunpack.c.l.b16 %v355
      %v640 = vpack.c.b16 %v636, %v635
      %v641 = vpack.c.b16 %v638, %v637
      %v642 = vpack.c.b16 %v639, %v639
      %vm643 = vcmask 326656
      %v645 = vsel %vm643, %v640, 0
      %v648 = vsel %vm643, %v641, 0
      %v651 = vsel %vm643, %v642, 0
      %vm653 = vcmask 1043456
      %v655 = vsel %vm653, %v604, 0
      %657 = vmatprep.subr.bf16.mxu0 0
      %658 = vmatpush1.bf16.msra.mxu0 %v602
      %659 = vmatprep.subr.bf16.mxu0 0
      %660 = vmatpush1.bf16.msra.mxu0 %v603
      %661 = vmatprep.subr.bf16.mxu0 0
      %662 = vmatpush1.bf16.msra.mxu0 %v655
      %663 = vmatprep.subr.bf16.mxu0 0
      %664 = vmatpush1.bf16.msra.mxu0 0
      %665 = vmatprep.subr.bf16.mxu0 0
      %666 = vmatpush1.bf16.msra.mxu0 0
      %667 = vmatprep.subr.bf16.mxu0 0
      %668 = vmatpush1.bf16.msra.mxu0 0
      %669 = vmatprep.subr.bf16.mxu0 0
      %670 = vmatpush1.bf16.msra.mxu0 0
      %671 = vmatprep.subr.bf16.mxu0 0
      %672 = vmatpush1.bf16.msra.mxu0 0
      %673 = vmatprep.subr.bf16.mxu0 0
      %674 = vmatpush1.bf16.msra.mxu0 0
      %675 = vmatprep.subr.bf16.mxu0 0
      %676 = vmatpush1.bf16.msra.mxu0 0
      %677 = vmatprep.subr.bf16.mxu0 0
      %678 = vmatpush1.bf16.msra.mxu0 0
      %679 = vmatprep.subr.bf16.mxu0 0
      %680 = vmatpush1.bf16.msra.mxu0 0
      %681 = vmatprep.subr.bf16.mxu0 0
      %682 = vmatpush1.bf16.msra.mxu0 0
      %683 = vmatprep.subr.bf16.mxu0 0
      %684 = vmatpush1.bf16.msra.mxu0 0
      %685 = vmatprep.subr.bf16.mxu0 0
      %686 = vmatpush1.bf16.msra.mxu0 0
      %687 = vmatprep.subr.bf16.mxu0 0
      %688 = vmatpush1.bf16.msra.mxu0 0
      %689 = vmatprep.mubr.bf16.mxu0 0
      %690 = vmatmul.mubr.bf16.gmra.mrb[0].mxu0 %v645
      %v691 = vpop.f32.mrb[0].mxu0
      %v692 = vadd.f32 %v608, %v691
      %v693 = vpop.f32.mrb[0].mxu0
      %v694 = vpop.f32.mrb[0].mxu0
      %v695 = vadd.f32 %v613, %v694
      %v696 = vpop.f32.mrb[0].mxu0
      %697 = vmatprep.mubr.bf16.mxu0 0
      %698 = vmatmul.mubr.bf16.gmra.mrb[0].mxu0 %v648
      %v699 = vpop.f32.mrb[0].mxu0
      %v700 = vadd.f32 %v618, %v699
      %v701 = vpop.f32.mrb[0].mxu0
      %v702 = vpop.f32.mrb[0].mxu0
      %v703 = vadd.f32 %v623, %v702
      %v704 = vpop.f32.mrb[0].mxu0
      %705 = vmatprep.mubr.bf16.mxu0 0
      %706 = vmatmul.mubr.bf16.gmra.mrb[0].mxu0 %v651
      %v707 = vpop.f32.mrb[0].mxu0
      %v708 = vadd.f32 %v628, %v707
      %v709 = vpop.f32.mrb[0].mxu0
      %v710 = vpop.f32.mrb[0].mxu0
      %v711 = vpop.f32.mrb[0].mxu0
      %712 = vdwg.mxu0
      %v713 = vmax.f32 %v692, 0.0
      %v714 = vmax.f32 %v695, 0.0
      %v715 = vmax.f32 %v700, 0.0
      %v716 = vmax.f32 %v703, 0.0
      %v717 = vmax.f32 %v708, 0.0
      %v718 = vpack.c.bf16 %v714, %v713
      %v719 = vpack.c.bf16 %v716, %v715
      %v720 = vpack.c.bf16 %v717, %v717
      %722 = vset.pattern.permute.xlu0 0
      %723 = vperm.xlu0 %722, %v380
      %v724 = vpop.permute.xlu0 %723
      %727 = vset.pattern.permute.xlu0 0
      %728 = vperm.xlu0 %727, %v381
      %v729 = vpop.permute.xlu0 %728
      %732 = vset.pattern.permute.xlu0 0
      %733 = vperm.xlu0 %732, %v382
      %v734 = vpop.permute.xlu0 %733
      %737 = vset.pattern.permute.xlu0 0
      %738 = vperm.xlu0 %737, %v383
      %v739 = vpop.permute.xlu0 %738
      %742 = vset.pattern.permute.xlu0 0
      %743 = vperm.xlu0 %742, %v384
      %v744 = vpop.permute.xlu0 %743
      %v751 = vunpack.c.l.b16 %v357
      %v752 = vunpack.c.l.b16 %v358
      %v753 = vunpack.c.l.b16 %v359
      %v754 = vunpack.c.l.b16 %v360
      %v755 = vunpack.c.l.b16 %v361
      %v756 = vpack.c.b16 %v752, %v751
      %v757 = vpack.c.b16 %v754, %v753
      %v758 = vpack.c.b16 %v755, %v755
      %v760 = vsel %vm643, %v756, 0
      %v763 = vsel %vm643, %v757, 0
      %v766 = vsel %vm643, %v758, 0
      %v769 = vsel %vm653, %v720, 0
      %771 = vmatprep.subr.bf16.mxu0 0
      %772 = vmatpush1.bf16.msra.mxu0 %v718
      %773 = vmatprep.subr.bf16.mxu0 0
      %774 = vmatpush1.bf16.msra.mxu0 %v719
      %775 = vmatprep.subr.bf16.mxu0 0
      %776 = vmatpush1.bf16.msra.mxu0 %v769
      %777 = vmatprep.subr.bf16.mxu0 0
      %778 = vmatpush1.bf16.msra.mxu0 0
      %779 = vmatprep.subr.bf16.mxu0 0
      %780 = vmatpush1.bf16.msra.mxu0 0
      %781 = vmatprep.subr.bf16.mxu0 0
      %782 = vmatpush1.bf16.msra.mxu0 0
      %783 = vmatprep.subr.bf16.mxu0 0
      %784 = vmatpush1.bf16.msra.mxu0 0
      %785 = vmatprep.subr.bf16.mxu0 0
      %786 = vmatpush1.bf16.msra.mxu0 0
      %787 = vmatprep.subr.bf16.mxu0 0
      %788 = vmatpush1.bf16.msra.mxu0 0
      %789 = vmatprep.subr.bf16.mxu0 0
      %790 = vmatpush1.bf16.msra.mxu0 0
      %791 = vmatprep.subr.bf16.mxu0 0
      %792 = vmatpush1.bf16.msra.mxu0 0
      %793 = vmatprep.subr.bf16.mxu0 0
      %794 = vmatpush1.bf16.msra.mxu0 0
      %795 = vmatprep.subr.bf16.mxu0 0
      %796 = vmatpush1.bf16.msra.mxu0 0
      %797 = vmatprep.subr.bf16.mxu0 0
      %798 = vmatpush1.bf16.msra.mxu0 0
      %799 = vmatprep.subr.bf16.mxu0 0
      %800 = vmatpush1.bf16.msra.mxu0 0
      %801 = vmatprep.subr.bf16.mxu0 0
      %802 = vmatpush1.bf16.msra.mxu0 0
      %803 = vmatprep.mubr.bf16.mxu0 0
      %804 = vmatmul.mubr.bf16.gmra.mrb[0].mxu0 %v760
      %v805 = vpop.f32.mrb[0].mxu0
      %v806 = vadd.f32 %v724, %v805
      %v807 = vpop.f32.mrb[0].mxu0
      %v808 = vpop.f32.mrb[0].mxu0
      %v809 = vadd.f32 %v729, %v808
      %v810 = vpop.f32.mrb[0].mxu0
      %811 = vmatprep.mubr.bf16.mxu0 0
      %812 = vmatmul.mubr.bf16.gmra.mrb[0].mxu0 %v763
      %v813 = vpop.f32.mrb[0].mxu0
      %v814 = vadd.f32 %v734, %v813
      %v815 = vpop.f32.mrb[0].mxu0
      %v816 = vpop.f32.mrb[0].mxu0
      %v817 = vadd.f32 %v739, %v816
      %v818 = vpop.f32.mrb[0].mxu0
      %819 = vmatprep.mubr.bf16.mxu0 0
      %820 = vmatmul.mubr.bf16.gmra.mrb[0].mxu0 %v766
      %v821 = vpop.f32.mrb[0].mxu0
      %v822 = vadd.f32 %v744, %v821
      %v823 = vpop.f32.mrb[0].mxu0
      %v824 = vpop.f32.mrb[0].mxu0
      %v825 = vpop.f32.mrb[0].mxu0
      %826 = vdwg.mxu0
      %v827 = vmax.f32 %v806, 0.0
      %v828 = vmax.f32 %v809, 0.0
      %v829 = vmax.f32 %v814, 0.0
      %v830 = vmax.f32 %v817, 0.0
      %v831 = vmax.f32 %v822, 0.0
      %v832 = vadd.f32 %v597, %v827
      %v833 = vadd.f32 %v598, %v828
      %v834 = vadd.f32 %v599, %v829
      %v835 = vadd.f32 %v600, %v830
      %v836 = vadd.f32 %v601, %v831
      %v837 = vpack.c.bf16 %v833, %v832
      %v838 = vpack.c.bf16 %v835, %v834
      %v839 = vpack.c.bf16 %v836, %v836
      %841 = vset.pattern.permute.xlu0 0
      %842 = vperm.xlu0 %841, %v386
      %v843 = vpop.permute.xlu0 %842
      %846 = vset.pattern.permute.xlu0 0
      %847 = vperm.xlu0 %846, %v387
      %v848 = vpop.permute.xlu0 %847
      %851 = vset.pattern.permute.xlu0 0
      %852 = vperm.xlu0 %851, %v388
      %v853 = vpop.permute.xlu0 %852
      %856 = vset.pattern.permute.xlu0 0
      %857 = vperm.xlu0 %856, %v389
      %v858 = vpop.permute.xlu0 %857
      %861 = vset.pattern.permute.xlu0 0
      %862 = vperm.xlu0 %861, %v390
      %v863 = vpop.permute.xlu0 %862
      %v870 = vunpack.c.l.b16 %v363
      %v871 = vunpack.c.l.b16 %v364
      %v872 = vunpack.c.l.b16 %v365
      %v873 = vunpack.c.l.b16 %v366
      %v874 = vunpack.c.l.b16 %v367
      %v875 = vpack.c.b16 %v871, %v870
      %v876 = vpack.c.b16 %v873, %v872
      %v877 = vpack.c.b16 %v874, %v874
      %v879 = vsel %vm643, %v875, 0
      %v882 = vsel %vm643, %v876, 0
      %v885 = vsel %vm643, %v877, 0
      %v888 = vsel %vm653, %v839, 0
      %890 = vmatprep.subr.bf16.mxu0 0
      %891 = vmatpush1.bf16.msra.mxu0 %v837
      %892 = vmatprep.subr.bf16.mxu0 0
      %893 = vmatpush1.bf16.msra.mxu0 %v838
      %894 = vmatprep.subr.bf16.mxu0 0
      %895 = vmatpush1.bf16.msra.mxu0 %v888
      %896 = vmatprep.subr.bf16.mxu0 0
      %897 = vmatpush1.bf16.msra.mxu0 0
      %898 = vmatprep.subr.bf16.mxu0 0
      %899 = vmatpush1.bf16.msra.mxu0 0
      %900 = vmatprep.subr.bf16.mxu0 0
      %901 = vmatpush1.bf16.msra.mxu0 0
      %902 = vmatprep.subr.bf16.mxu0 0
      %903 = vmatpush1.bf16.msra.mxu0 0
      %904 = vmatprep.subr.bf16.mxu0 0
      %905 = vmatpush1.bf16.msra.mxu0 0
      %906 = vmatprep.subr.bf16.mxu0 0
      %907 = vmatpush1.bf16.msra.mxu0 0
      %908 = vmatprep.subr.bf16.mxu0 0
      %909 = vmatpush1.bf16.msra.mxu0 0
      %910 = vmatprep.subr.bf16.mxu0 0
      %911 = vmatpush1.bf16.msra.mxu0 0
      %912 = vmatprep.subr.bf16.mxu0 0
      %913 = vmatpush1.bf16.msra.mxu0 0
      %914 = vmatprep.subr.bf16.mxu0 0
      %915 = vmatpush1.bf16.msra.mxu0 0
      %916 = vmatprep.subr.bf16.mxu0 0
      %917 = vmatpush1.bf16.msra.mxu0 0
      %918 = vmatprep.subr.bf16.mxu0 0
      %919 = vmatpush1.bf16.msra.mxu0 0
      %920 = vmatprep.subr.bf16.mxu0 0
      %921 = vmatpush1.bf16.msra.mxu0 0
      %922 = vmatprep.mubr.bf16.mxu0 0
      %923 = vmatmul.mubr.bf16.gmra.mrb[0].mxu0 %v879
      %v924 = vpop.f32.mrb[0].mxu0
      %v925 = vadd.f32 %v843, %v924
      %v926 = vpop.f32.mrb[0].mxu0
      %v927 = vpop.f32.mrb[0].mxu0
      %v928 = vadd.f32 %v848, %v927
      %v929 = vpop.f32.mrb[0].mxu0
      %930 = vmatprep.mubr.bf16.mxu0 0
      %931 = vmatmul.mubr.bf16.gmra.mrb[0].mxu0 %v882
      %v932 = vpop.f32.mrb[0].mxu0
      %v933 = vadd.f32 %v853, %v932
      %v934 = vpop.f32.mrb[0].mxu0
      %v935 = vpop.f32.mrb[0].mxu0
      %v936 = vadd.f32 %v858, %v935
      %v937 = vpop.f32.mrb[0].mxu0
      %938 = vmatprep.mubr.bf16.mxu0 0
      %939 = vmatmul.mubr.bf16.gmra.mrb[0].mxu0 %v885
      %v940 = vpop.f32.mrb[0].mxu0
      %v941 = vadd.f32 %v863, %v940
      %v942 = vpop.f32.mrb[0].mxu0
      %v943 = vpop.f32.mrb[0].mxu0
      %v944 = vpop.f32.mrb[0].mxu0
      %945 = vdwg.mxu0
      %v946 = vmax.f32 %v925, 0.0
      %v947 = vmax.f32 %v928, 0.0
      %v948 = vmax.f32 %v933, 0.0
      %v949 = vmax.f32 %v936, 0.0
      %v950 = vmax.f32 %v941, 0.0
      %v951 = vpack.c.bf16 %v947, %v946
      %v952 = vpack.c.bf16 %v949, %v948
      %v953 = vpack.c.bf16 %v950, %v950
      %955 = vset.pattern.permute.xlu0 0
      %956 = vperm.xlu0 %955, %v392
      %v957 = vpop.permute.xlu0 %956
      %960 = vset.pattern.permute.xlu0 0
      %961 = vperm.xlu0 %960, %v393
      %v962 = vpop.permute.xlu0 %961
      %965 = vset.pattern.permute.xlu0 0
      %966 = vperm.xlu0 %965, %v394
      %v967 = vpop.permute.xlu0 %966
      %970 = vset.pattern.permute.xlu0 0
      %971 = vperm.xlu0 %970, %v395
      %v972 = vpop.permute.xlu0 %971
      %975 = vset.pattern.permute.xlu0 0
      %976 = vperm.xlu0 %975, %v396
      %v977 = vpop.permute.xlu0 %976
      %v984 = vunpack.c.l.b16 %v369
      %v985 = vunpack.c.l.b16 %v370
      %v986 = vunpack.c.l.b16 %v371
      %v987 = vunpack.c.l.b16 %v372
      %v988 = vunpack.c.l.b16 %v373
      %v989 = vpack.c.b16 %v985, %v984
      %v990 = vpack.c.b16 %v987, %v986
      %v991 = vpack.c.b16 %v988, %v988
      %v993 = vsel %vm643, %v989, 0
      %v996 = vsel %vm643, %v990, 0
      %v999 = vsel %vm643, %v991, 0
      %v1002 = vsel %vm653, %v953, 0
      %1004 = vmatprep.subr.bf16.mxu0 0
      %1005 = vmatpush1.bf16.msra.mxu0 %v951
      %1006 = vmatprep.subr.bf16.mxu0 0
      %1007 = vmatpush1.bf16.msra.mxu0 %v952
      %1008 = vmatprep.subr.bf16.mxu0 0
      %1009 = vmatpush1.bf16.msra.mxu0 %v1002
      %1010 = vmatprep.subr.bf16.mxu0 0
      %1011 = vmatpush1.bf16.msra.mxu0 0
      %1012 = vmatprep.subr.bf16.mxu0 0
      %1013 = vmatpush1.bf16.msra.mxu0 0
      %1014 = vmatprep.subr.bf16.mxu0 0
      %1015 = vmatpush1.bf16.msra.mxu0 0
      %1016 = vmatprep.subr.bf16.mxu0 0
      %1017 = vmatpush1.bf16.msra.mxu0 0
      %1018 = vmatprep.subr.bf16.mxu0 0
      %1019 = vmatpush1.bf16.msra.mxu0 0
      %1020 = vmatprep.subr.bf16.mxu0 0
      %1021 = vmatpush1.bf16.msra.mxu0 0
      %1022 = vmatprep.subr.bf16.mxu0 0
      %1023 = vmatpush1.bf16.msra.mxu0 0
      %1024 = vmatprep.subr.bf16.mxu0 0
      %1025 = vmatpush1.bf16.msra.mxu0 0
      %1026 = vmatprep.subr.bf16.mxu0 0
      %1027 = vmatpush1.bf16.msra.mxu0 0
      %1028 = vmatprep.subr.bf16.mxu0 0
      %1029 = vmatpush1.bf16.msra.mxu0 0
      %1030 = vmatprep.subr.bf16.mxu0 0
      %1031 = vmatpush1.bf16.msra.mxu0 0
      %1032 = vmatprep.subr.bf16.mxu0 0
      %1033 = vmatpush1.bf16.msra.mxu0 0
      %1034 = vmatprep.subr.bf16.mxu0 0
      %1035 = vmatpush1.bf16.msra.mxu0 0
      %1036 = vmatprep.mubr.bf16.mxu0 0
      %1037 = vmatmul.mubr.bf16.gmra.mrb[0].mxu0 %v993
      %v1038 = vpop.f32.mrb[0].mxu0
      %v1039 = vadd.f32 %v957, %v1038
      %v1040 = vpop.f32.mrb[0].mxu0
      %v1041 = vpop.f32.mrb[0].mxu0
      %v1042 = vadd.f32 %v962, %v1041
      %v1043 = vpop.f32.mrb[0].mxu0
      %1044 = vmatprep.mubr.bf16.mxu0 0
      %1045 = vmatmul.mubr.bf16.gmra.mrb[0].mxu0 %v996
      %v1046 = vpop.f32.mrb[0].mxu0
      %v1047 = vadd.f32 %v967, %v1046
      %v1048 = vpop.f32.mrb[0].mxu0
      %v1049 = vpop.f32.mrb[0].mxu0
      %v1050 = vadd.f32 %v972, %v1049
      %v1051 = vpop.f32.mrb[0].mxu0
      %1052 = vmatprep.mubr.bf16.mxu0 0
      %1053 = vmatmul.mubr.bf16.gmra.mrb[0].mxu0 %v999
      %v1054 = vpop.f32.mrb[0].mxu0
      %v1055 = vadd.f32 %v977, %v1054
      %v1056 = vpop.f32.mrb[0].mxu0
      %v1057 = vpop.f32.mrb[0].mxu0
      %v1058 = vpop.f32.mrb[0].mxu0
      %1059 = vdwg.mxu0
      %v1060 = vmax.f32 %v1039, 0.0
      %v1061 = vmax.f32 %v1042, 0.0
      %v1062 = vmax.f32 %v1047, 0.0
      %v1063 = vmax.f32 %v1050, 0.0
      %v1064 = vmax.f32 %v1055, 0.0
      %v1065 = vadd.f32 %v832, %v1060
      %v1066 = vadd.f32 %v833, %v1061
      %v1067 = vadd.f32 %v834, %v1062
      %v1068 = vadd.f32 %v835, %v1063
      %v1069 = vadd.f32 %v836, %v1064
      %vm1070 = vcmask 130048
      %1071 = vst.msk [vmem:[%s334] sm:$0xff] %vm1070, %v1065
      %1072 = vst.msk [vmem:[%s334 + $0x8] sm:$0xff] %vm1070, %v1066
      %1073 = vst.msk [vmem:[%s334 + $0x10] sm:$0xff] %vm1070, %v1067
      %1074 = vst.msk [vmem:[%s334 + $0x18] sm:$0xff] %vm1070, %v1068
      %1075 = vst.msk [vmem:[%s334 + $0x20] sm:$0xff] %vm1070, %v1069
      %p1076 = scmp.lt.s32.totalorder %s22, 1
      %s1077 = scalar_select %p1076, %s22, 1
      %p1078 = scmp.lt.s32.totalorder %s23, 0
      %s1079 = scalar_select %p1078, %s23, 0
      %s1080 = smul.addr %s1077, 5
      %s1081 = sadd.s32 %s1079, %s1080
      %s1082 = smul.addr %s1081, 8
      %s1083 = scalar_lea.vmem %s7, %s1082
      // Predicated region
      $region49: #{feature_model_forward.1} parent=47 // pred_check
        %p1084 = pneg %p211
      $region50: #{feature_model_forward.1} parent=47 // pred_check_branch
        %1086 = sbr.rel (%p1084) target = $region52
      $region51: #{feature_model_forward.1} parent=47 // pred_region
        _
      $region52: #{feature_model_forward.1} parent=47 // pred_fallthru
        _
    $region48: #{feature_model_forward.1} parent=5 // pred_fallthru
      _
    %p1087 = scmp.le.s32.totalorder 2, %s13
    // Predicated region
    $region53: #{feature_model_forward.1} parent=5 // pred_check
      %p1088 = pneg %p1087
    $region54: #{feature_model_forward.1} parent=5 // pred_check_branch
      %1090 = sbr.rel (%p1088) target = $region56
    $region55: #{feature_model_forward.1} parent=5 // pred_region
      %s1091 = ssub.s32 %s13, 2
      // Predicated region
      $region57: #{feature_model_forward.1} parent=55 // pred_check
        %p1092 = pneg %p217
      $region58: #{feature_model_forward.1} parent=55 // pred_check_branch
        %1094 = sbr.rel (%p1092) target = $region60
      $region59: #{feature_model_forward.1} parent=55 // pred_region
        %p1095 = scmp.lt.s32.totalorder %s24, 1
        %s1096 = scalar_select %p1095, %s24, 1
        %p1097 = scmp.lt.s32.totalorder %s25, 0
        %s1098 = scalar_select %p1097, %s25, 0
        %s1099 = smul.addr %s1096, 5
        %s1100 = sadd.s32 %s1098, %s1099
        %s1101 = smul.addr %s1100, 8
        %s1102 = scalar_lea.vmem %s7, %s1101
      $region60: #{feature_model_forward.1} parent=55 // pred_fallthru
        _
    $region56: #{feature_model_forward.1} parent=5 // pred_fallthru
      _
  $region6: #{feature_model_forward.1} parent=0 // loop_footer
    %s17 = sadd.s32 1, %s13
  $region7: #{feature_model_forward.1} parent=0 // loop_footer_branch
    %12 = sbr.rel target = $region3
  $region8: #{feature_model_forward.1} parent=0 // loop_exit
    _

</llo_original>
